<compile_context>
chip_gen: v7x
topology: tpu7x:2x2x1
jax: 0.10.0
libtpu: 0.0.40
codegen_flags: <defaults>
</compile_context>

<pallas_src>
import functools

import jax
import jax.numpy as jnp
from jax.experimental import pallas as pl
from jax.experimental.pallas import tpu as pltpu

BN_EPS = 1e-5


def _round_up(x, m):
    return (x + m - 1) // m * m


def mlp_layer_kernel(x_ref, w_ref, gamma_ref, beta_ref, o_ref):
    # x_ref:     (B, D_in_p)   float32  (full batch resident)
    # w_ref:     (D_in_p, tn)  float32  (one feature tile of the weights)
    # gamma_ref: (1, tn)       float32  BatchNorm weight tile
    # beta_ref:  (1, tn)       float32  BatchNorm bias tile
    # o_ref:     (B, tn)       float32

    # --- Linear (no bias: BN path disables the Linear bias; a pre-BN bias is
    #     mathematically cancelled by the mean subtraction anyway) ---
    h = jnp.dot(x_ref[...], w_ref[...], preferred_element_type=jnp.float32)

    # --- BatchNorm1d, training-mode (biased) statistics over the batch axis.
    #     Stats are per-feature, so tiling the feature axis is exact. ---
    mean = jnp.mean(h, axis=0, keepdims=True)
    centered = h - mean
    var = jnp.mean(centered * centered, axis=0, keepdims=True)

    # Fold gamma into the rsqrt -> a single (1, tn) scale row; the full-tile
    # epilogue is then one mul + add.
    scale = gamma_ref[...] * jax.lax.rsqrt(var + BN_EPS)

    # --- ReLU activation; dropout p=0.0 is the identity ---
    o_ref[...] = jnp.maximum(centered * scale + beta_ref[...], 0.0)


@functools.partial(jax.jit, static_argnames=("tn",))
def mlp_layer(x, w, gamma, beta, *, tn=128):
    """x: (B, D_in), w: (D_in, D_out), gamma/beta: (1, D_out) -> (B, D_out)."""
    B, D_in = x.shape
    D_out = w.shape[1]

    # Pad feature dims so every block is (8, 128)-aligned and the output block
    # is lane-dense (unmasked vst). Zero padding does not change the matmul;
    # padded output columns are sliced off below.
    d_in_p = _round_up(D_in, 8)
    d_out_p = _round_up(D_out, tn)

    if d_in_p != D_in:
        x = jnp.pad(x, ((0, 0), (0, d_in_p - D_in)))
        w = jnp.pad(w, ((0, d_in_p - D_in), (0, 0)))
    if d_out_p != D_out:
        w = jnp.pad(w, ((0, 0), (0, d_out_p - D_out)))
        gamma = jnp.pad(gamma, ((0, 0), (0, d_out_p - D_out)),
                        constant_values=1.0)
        beta = jnp.pad(beta, ((0, 0), (0, d_out_p - D_out)))

    n_blocks = d_out_p // tn

    # VMEM budget: x resident + double-buffered w / out tiles + param rows.
    # Sized with headroom but capped for v7x's smaller (64 MiB physical) VMEM.
    working_bytes = 4 * (2 * B * d_in_p + 2 * d_in_p * tn + 2 * B * tn + 4 * tn)
    vmem_limit = int(min(max(4 * working_bytes, 8 << 20), 48 << 20))

    out_padded = pl.pallas_call(
        mlp_layer_kernel,
        out_shape=jax.ShapeDtypeStruct((B, d_out_p), jnp.float32),
        grid_spec=pltpu.PrefetchScalarGridSpec(
            num_scalar_prefetch=0,
            grid=(n_blocks,),
            in_specs=[
                pl.BlockSpec((B, d_in_p), lambda j: (0, 0)),   # x (full)
                pl.BlockSpec((d_in_p, tn), lambda j: (0, j)),  # w tile
                pl.BlockSpec((1, tn), lambda j: (0, j)),       # gamma tile
                pl.BlockSpec((1, tn), lambda j: (0, j)),       # beta tile
            ],
            out_specs=pl.BlockSpec((B, tn), lambda j: (0, j)),
        ),
        compiler_params=pltpu.CompilerParams(
            dimension_semantics=("parallel",),   # feature tiles are independent
            vmem_limit_bytes=vmem_limit,
        ),
    )(x, w, gamma, beta)

    return out_padded[:, :D_out]


def reference(x, w, gamma, beta):
    h = x @ w  # bias disabled in the batchnorm configuration
    mean = jnp.mean(h, axis=0, keepdims=True)
    var = jnp.mean((h - mean) ** 2, axis=0, keepdims=True)
    h = (h - mean) * jax.lax.rsqrt(var + BN_EPS) * gamma + beta
    return jnp.maximum(h, 0.0)


if __name__ == "__main__":
    # Small shapes consistent with the module's forward: x is (batch, input_dim)
    batch = 8
    input_dim = 32
    dnn_lay = 64

    key = jax.random.PRNGKey(0)
    kx, kw = jax.random.split(key)

    x = jax.random.normal(kx, (batch, input_dim), dtype=jnp.float32)

    # Deterministic parameter init mirroring the PyTorch module's __init__:
    #   W ~ Uniform(-sqrt(0.01/(in+out)), +sqrt(0.01/(in+out)))
    lim = jnp.sqrt(0.01 / (input_dim + dnn_lay))
    w = jax.random.uniform(
        kw, (input_dim, dnn_lay), minval=-lim, maxval=lim, dtype=jnp.float32
    )
    # BatchNorm1d default init: weight=1, bias=0 (Linear bias disabled -> unused)
    gamma = jnp.ones((1, dnn_lay), dtype=jnp.float32)
    beta = jnp.zeros((1, dnn_lay), dtype=jnp.float32)

    out = mlp_layer(x, w, gamma, beta)
    jax.block_until_ready(out)

    ref = reference(x, w, gamma, beta)
    assert out.shape == (batch, dnn_lay)
    assert jnp.allclose(out, ref, atol=1e-4, rtol=1e-4)

    print("KERNEL_OK")
</pallas_src>

<mosaic_0001>
module attributes {stable_mosaic.version = 11 : i64} {
  func.func @mlp_layer_kernel(%arg0: i32, %arg1: memref<8x32xf32, #tpu.memory_space<vmem>>, %arg2: memref<32x128xf32, #tpu.memory_space<vmem>>, %arg3: memref<1x128xf32, #tpu.memory_space<vmem>>, %arg4: memref<1x128xf32, #tpu.memory_space<vmem>>, %arg5: memref<8x128xf32, #tpu.memory_space<vmem>>) attributes {dimension_semantics = [#tpu.dimension_semantics<parallel>], iteration_bounds = array<i64: 1>, scalar_prefetch = 0 : i64, scratch_operands = 0 : i64, tpu.core_type = #tpu.core_type<tc>, window_params = [{pipeline_mode = #tpu.pipeline_mode<synchronous>, transform_indices = @transform_0, window_bounds = array<i64: 8, 32>}, {transform_indices = @transform_1, window_bounds = array<i64: 32, 128>}, {transform_indices = @transform_2, window_bounds = array<i64: 1, 128>}, {transform_indices = @transform_3, window_bounds = array<i64: 1, 128>}, {transform_indices = @transform_4, window_bounds = array<i64: 8, 128>}]} {
    %c0 = arith.constant 0 : index
    %c0_0 = arith.constant 0 : index
    %0 = vector.load %arg1[%c0, %c0_0] : memref<8x32xf32, #tpu.memory_space<vmem>>, vector<8x32xf32>
    %c0_1 = arith.constant 0 : index
    %c0_2 = arith.constant 0 : index
    %1 = vector.load %arg2[%c0_1, %c0_2] : memref<32x128xf32, #tpu.memory_space<vmem>>, vector<32x128xf32>
    %cst = arith.constant dense<0.000000e+00> : vector<8x128xf32>
    %2 = tpu.matmul %0, %1, %cst {dimension_numbers = #tpu.dot_dimension_numbers<[1], [0], [0], [1], [0, 0, 1, 1], [], []>} : vector<8x32xf32>, vector<32x128xf32>, vector<8x128xf32> -> vector<8x128xf32>
    %cst_3 = arith.constant dense<0.000000e+00> : vector<128xf32>
    %3 = vector.multi_reduction <add>, %2, %cst_3 [0] : vector<8x128xf32> to vector<128xf32>
    %4 = vector.shape_cast %3 : vector<128xf32> to vector<1x128xf32>
    %cst_4 = arith.constant 8.000000e+00 : f32
    %5 = vector.broadcast %cst_4 : f32 to vector<1x128xf32>
    %6 = arith.divf %4, %5 : vector<1x128xf32>
    %7 = vector.broadcast %6 : vector<1x128xf32> to vector<8x128xf32>
    %8 = arith.subf %2, %7 : vector<8x128xf32>
    %9 = arith.mulf %8, %8 : vector<8x128xf32>
    %cst_5 = arith.constant dense<0.000000e+00> : vector<128xf32>
    %10 = vector.multi_reduction <add>, %9, %cst_5 [0] : vector<8x128xf32> to vector<128xf32>
    %11 = vector.shape_cast %10 : vector<128xf32> to vector<1x128xf32>
    %cst_6 = arith.constant 8.000000e+00 : f32
    %12 = vector.broadcast %cst_6 : f32 to vector<1x128xf32>
    %13 = arith.divf %11, %12 : vector<1x128xf32>
    %c0_7 = arith.constant 0 : index
    %c0_8 = arith.constant 0 : index
    %14 = vector.load %arg3[%c0_7, %c0_8] : memref<1x128xf32, #tpu.memory_space<vmem>>, vector<1x128xf32>
    %cst_9 = arith.constant 9.99999974E-6 : f32
    %15 = vector.broadcast %cst_9 : f32 to vector<1x128xf32>
    %16 = arith.addf %13, %15 : vector<1x128xf32>
    %17 = math.rsqrt %16 : vector<1x128xf32>
    %18 = arith.mulf %14, %17 : vector<1x128xf32>
    %19 = vector.broadcast %18 : vector<1x128xf32> to vector<8x128xf32>
    %20 = arith.mulf %8, %19 : vector<8x128xf32>
    %c0_10 = arith.constant 0 : index
    %c0_11 = arith.constant 0 : index
    %21 = vector.load %arg4[%c0_10, %c0_11] : memref<1x128xf32, #tpu.memory_space<vmem>>, vector<1x128xf32>
    %22 = vector.broadcast %21 : vector<1x128xf32> to vector<8x128xf32>
    %23 = arith.addf %20, %22 : vector<8x128xf32>
    %cst_12 = arith.constant 0.000000e+00 : f32
    %24 = vector.broadcast %cst_12 : f32 to vector<8x128xf32>
    %25 = arith.maximumf %23, %24 : vector<8x128xf32>
    %c0_13 = arith.constant 0 : index
    %c0_14 = arith.constant 0 : index
    %26 = vector.load %arg5[%c0_13, %c0_14] : memref<8x128xf32, #tpu.memory_space<vmem>>, vector<8x128xf32>
    tpu.vector_store %arg5[%c0_13, %c0_14], %25 {strides = array<i32>} : memref<8x128xf32, #tpu.memory_space<vmem>>, vector<8x128xf32>,
    return
  }
  func.func @transform_0(%arg0: i32) -> (i32, i32) {
    %c0_i32 = arith.constant 0 : i32
    %c0_i32_0 = arith.constant 0 : i32
    %c0_i32_1 = arith.constant 0 : i32
    return %c0_i32, %c0_i32_0 : i32, i32
  }
  func.func @transform_1(%arg0: i32) -> (i32, i32) {
    %c0_i32 = arith.constant 0 : i32
    %c0_i32_0 = arith.constant 0 : i32
    return %c0_i32, %arg0 : i32, i32
  }
  func.func @transform_2(%arg0: i32) -> (i32, i32) {
    %c0_i32 = arith.constant 0 : i32
    %c0_i32_0 = arith.constant 0 : i32
    return %c0_i32, %arg0 : i32, i32
  }
  func.func @transform_3(%arg0: i32) -> (i32, i32) {
    %c0_i32 = arith.constant 0 : i32
    %c0_i32_0 = arith.constant 0 : i32
    return %c0_i32, %arg0 : i32, i32
  }
  func.func @transform_4(%arg0: i32) -> (i32, i32) {
    %c0_i32 = arith.constant 0 : i32
    %c0_i32_0 = arith.constant 0 : i32
    return %c0_i32, %arg0 : i32, i32
  }
}

</mosaic_0001>

<llo_original>
// kernel: mlp_layer.1
$region0: #{mlp_layer.1}
  #allocation0 [shape = 'u32[]', space=smem, size = 0x4, offset = 0x4, fixed_abs, tag = 'smem constant byte address 0x4 - core index']
  #allocation1 [shape = 'u32[144,128]{1,0:T(1,128)}', space=vmem, size = 0x12000, scoped, tag = 'internal scratch']
  %s0 = inlined_call_operand.vmem [shape: f32[8,32], index: 0, kind: input, shape index: {}]
  %s1 = inlined_call_operand.vmem [shape: f32[32,128], index: 1, kind: input, shape index: {}]
  %s2 = inlined_call_operand.vmem [shape: f32[1,128], index: 2, kind: input, shape index: {}]
  %s3 = inlined_call_operand.vmem [shape: f32[1,128], index: 3, kind: input, shape index: {}]
  %s4 = inlined_call_operand.hbm [shape: f32[8,128], index: 4, kind: output, shape index: {}]
  %s5 = sld [smem:[#allocation0]]
  $region26: #{mlp_layer.1} parent=0
    _
  %s7 = ssub.s32 1, %s5
  %s8 = scalar_select 0, %s7, %s5
  $region1: #{mlp_layer.1} parent=0
    #allocation2 [shape = 'u8[4096]{0}', space=vmem, size = 0x1000, scoped, tag = 'output window, operand 0, single buffered']
    #allocation3 [shape = 's32[1]{0}', space=sflag, size = 0x4, scoped, tag = 'scoped memory for mlp_layer.1']
    %9 = vsyncpa [#allocation3], 0
    // Predicated region
    $region2: #{mlp_layer.1} parent=1 // pred_check
      _
    $region3: #{mlp_layer.1} parent=1 // pred_check_branch
      %11 = sbr.rel (0) target = $region5
    $region4: #{mlp_layer.1} parent=1 // pred_region
      _
    $region5: #{mlp_layer.1} parent=1 // pred_fallthru
      _
    // Predicated region
    $region6: #{mlp_layer.1} parent=1 // pred_check
      _
    $region7: #{mlp_layer.1} parent=1 // pred_check_branch
      %13 = sbr.rel (0) target = $region9
    $region8: #{mlp_layer.1} parent=1 // pred_region
      _
    $region9: #{mlp_layer.1} parent=1 // pred_fallthru
      _
    // Predicated region
    $region10: #{mlp_layer.1} parent=1 // pred_check
      _
    $region11: #{mlp_layer.1} parent=1 // pred_check_branch
      %15 = sbr.rel (0) target = $region13
    $region12: #{mlp_layer.1} parent=1 // pred_region
      _
    $region13: #{mlp_layer.1} parent=1 // pred_fallthru
      _
    // Predicated region
    $region14: #{mlp_layer.1} parent=1 // pred_check
      _
    $region15: #{mlp_layer.1} parent=1 // pred_check_branch
      %17 = sbr.rel (0) target = $region17
    $region16: #{mlp_layer.1} parent=1 // pred_region
      _
    $region17: #{mlp_layer.1} parent=1 // pred_fallthru
      _
    %v18 = vld [vmem:[%s0] sm:$0xff]
    %v19 = vld [vmem:[%s1] sm:$0xff]
    %v20 = vld [vmem:[%s1 + $0x8] sm:$0xff]
    %v21 = vld [vmem:[%s1 + $0x10] sm:$0xff]
    %v22 = vld [vmem:[%s1 + $0x18] sm:$0xff]
    %vm23 = vcmask 261120
    %v25 = vsel %vm23, %v18, 0
    %27 = vmatprep.subr.mxu0 0.0
    %28 = vmatpush1.msra.mxu0 %v19
    %29 = vmatprep.subr.mxu0 0.0
    %30 = vmatpush1.msra.mxu0 %v20
    %31 = vmatprep.subr.mxu0 0.0
    %32 = vmatpush1.msra.mxu0 %v21
    %33 = vmatprep.subr.mxu0 0.0
    %34 = vmatpush1.msra.mxu0 %v22
    %35 = vmatprep.subr.mxu0 0.0
    %36 = vmatpush1.msra.mxu0 0.0
    %37 = vmatprep.subr.mxu0 0.0
    %38 = vmatpush1.msra.mxu0 0.0
    %39 = vmatprep.subr.mxu0 0.0
    %40 = vmatpush1.msra.mxu0 0.0
    %41 = vmatprep.subr.mxu0 0.0
    %42 = vmatpush1.msra.mxu0 0.0
    %43 = vmatprep.subr.mxu0 0.0
    %44 = vmatpush1.msra.mxu0 0.0
    %45 = vmatprep.subr.mxu0 0.0
    %46 = vmatpush1.msra.mxu0 0.0
    %47 = vmatprep.subr.mxu0 0.0
    %48 = vmatpush1.msra.mxu0 0.0
    %49 = vmatprep.subr.mxu0 0.0
    %50 = vmatpush1.msra.mxu0 0.0
    %51 = vmatprep.subr.mxu0 0.0
    %52 = vmatpush1.msra.mxu0 0.0
    %53 = vmatprep.subr.mxu0 0.0
    %54 = vmatpush1.msra.mxu0 0.0
    %55 = vmatprep.subr.mxu0 0.0
    %56 = vmatpush1.msra.mxu0 0.0
    %57 = vmatprep.subr.mxu0 0.0
    %58 = vmatpush1.msra.mxu0 0.0
    %59 = vmatprep.subr.mxu0 0.0
    %60 = vmatpush1.msra.mxu0 0.0
    %61 = vmatprep.subr.mxu0 0.0
    %62 = vmatpush1.msra.mxu0 0.0
    %63 = vmatprep.subr.mxu0 0.0
    %64 = vmatpush1.msra.mxu0 0.0
    %65 = vmatprep.subr.mxu0 0.0
    %66 = vmatpush1.msra.mxu0 0.0
    %67 = vmatprep.subr.mxu0 0.0
    %68 = vmatpush1.msra.mxu0 0.0
    %69 = vmatprep.subr.mxu0 0.0
    %70 = vmatpush1.msra.mxu0 0.0
    %71 = vmatprep.subr.mxu0 0.0
    %72 = vmatpush1.msra.mxu0 0.0
    %73 = vmatprep.subr.mxu0 0.0
    %74 = vmatpush1.msra.mxu0 0.0
    %75 = vmatprep.subr.mxu0 0.0
    %76 = vmatpush1.msra.mxu0 0.0
    %77 = vmatprep.subr.mxu0 0.0
    %78 = vmatpush1.msra.mxu0 0.0
    %79 = vmatprep.subr.mxu0 0.0
    %80 = vmatpush1.msra.mxu0 0.0
    %81 = vmatprep.subr.mxu0 0.0
    %82 = vmatpush1.msra.mxu0 0.0
    %83 = vmatprep.subr.mxu0 0.0
    %84 = vmatpush1.msra.mxu0 0.0
    %85 = vmatprep.subr.mxu0 0.0
    %86 = vmatpush1.msra.mxu0 0.0
    %87 = vmatprep.subr.mxu0 0.0
    %88 = vmatpush1.msra.mxu0 0.0
    %89 = vmatprep.subr.mxu0 0.0
    %90 = vmatpush1.msra.mxu0 0.0
    %91 = vmatprep.mubr.f32.mxu0 0.0
    %92 = vmatmul.mubr.f32.gmra.mrb[0].mxu0 %v25
    %v93 = vpop.f32.mrb[0].mxu0
    %v94 = vadd.f32 0.0, %v93
    %v95 = vpop.f32.mrb[0].mxu0
    %96 = vdwg.mxu0
    %v97 = vrot.slane %v94, 4
    %v98 = vadd.f32 %v94, %v97
    %v99 = vrot.slane %v98, 2
    %v100 = vadd.f32 %v98, %v99
    %v101 = vrot.slane %v100, 1
    %v102 = vadd.f32 %v100, %v101
    %v103 = vrcp.pop 8.0
    %v104 = vmul.f32 %v102, %v103
    %v105 = vsub.f32 %v94, %v104
    %v106 = vmul.f32 %v105, %v105
    %v107 = vrot.slane %v106, 4
    %v108 = vadd.f32 %v106, %v107
    %v109 = vrot.slane %v108, 2
    %v110 = vadd.f32 %v108, %v109
    %v111 = vrot.slane %v110, 1
    %v112 = vadd.f32 %v110, %v111
    %v113 = vmul.f32 %v112, %v103
    %v114 = vld [vmem:[%s2] sm:$0x1]
    %v115 = vadd.f32 %v113, 1e-05
    %v116 = vrsqrt.pop %v115
    %v117 = vmul.f32 %v114, %v116
    %v119 = vlaneseq
    %v120 = vshrl.u32 %v119, 7
    %v121 = vsub.s32 0, %v120
    %v122 = vrot.slane %v117, %v121
    %v124 = vmul.f32 %v105, %v122
    %v125 = vld [vmem:[%s3] sm:$0x1]
    %v127 = vlaneseq
    %v128 = vshrl.u32 %v127, 7
    %v129 = vsub.s32 0, %v128
    %v130 = vrot.slane %v125, %v129
    %v132 = vadd.f32 %v124, %v130
    %v133 = vmax.f32 %v132, 0.0
    %134 = vst [vmem:[#allocation2] sm:$0xff] %v133
    // Predicated region
    $region18: #{mlp_layer.1} parent=1 // pred_check
      _
    $region19: #{mlp_layer.1} parent=1 // pred_check_branch
      %136 = sbr.rel (0) target = $region21
    $region20: #{mlp_layer.1} parent=1 // pred_region
      %s138 = ssub.s32 128, 128
      %139 = vsyncadd [#allocation3], %s138
      %s141 = sshll.u32 [#allocation2], 4
      %s142 = int_to_ptr.vmem [resolvable:$true] %s141
      %144 = dma.vmem_to_hbm [thread:$0]  %s142, 128, %s4, [#allocation3]
    $region21: #{mlp_layer.1} parent=1 // pred_fallthru
      _
    // Predicated region
    $region22: #{mlp_layer.1} parent=1 // pred_check
      _
    $region23: #{mlp_layer.1} parent=1 // pred_check_branch
      %146 = sbr.rel (0) target = $region25
    $region24: #{mlp_layer.1} parent=1 // pred_region
      %147 = dma.done [#allocation3], 128
    $region25: #{mlp_layer.1} parent=1 // pred_fallthru
      _
    %148 = vsyncpa [#allocation3], 1

</llo_original>
